<compile_context>
chip_gen: v6e
topology: v6e:2x2x1
jax: 0.10.0
libtpu: 0.0.40
codegen_flags: <defaults>
</compile_context>

<pallas_src>
import jax
import jax.numpy as jnp
import numpy as np
from jax.experimental import pallas as pl
from jax.experimental.pallas import tpu as pltpu


def _round_up(x, m):
    return (x + m - 1) // m * m


def _pow2_tile(n, target):
    """Largest 128 * 2^k tile <= min(target, round_up(n, 128))."""
    cap = min(target, _round_up(n, 128))
    t = 128
    while t * 2 <= cap:
        t *= 2
    return t


# ----------------------------------------------------------------------------
# Kernel 1: RGCN encoder.
#   kg[i*tm:(i+1)*tm] = root + bias + sum_r sum_k adj[r, rows, kcols] @ rel_emb[r, kcols]
# grid = (N//tm, R, N//tk): rows "parallel", relation and contraction "arbitrary"
# (reduction axes last).  adj / rel_emb stream as bf16, accumulation is f32 in VMEM.
# VMEM footprint (tm=1024, tk=512, D=32): ~2.5 MiB — fits the 32 MiB scoped default
# on every generation including v7x (64 MiB physical), independent of n_entity.
# ----------------------------------------------------------------------------
def _rgcn_kernel(adj_ref, rel_ref, root_ref, bias_ref, out_ref, acc_ref):
    r = pl.program_id(1)
    k = pl.program_id(2)

    @pl.when((r == 0) & (k == 0))
    def _():
        acc_ref[...] = root_ref[...] + bias_ref[...]

    acc_ref[...] += jnp.dot(adj_ref[0], rel_ref[0],
                            preferred_element_type=jnp.float32)

    @pl.when((r == pl.num_programs(1) - 1) & (k == pl.num_programs(2) - 1))
    def _():
        out_ref[...] = acc_ref[...].astype(out_ref.dtype)


def rgcn_encode(adj, rel_emb, root, bias, tm, tk):
    """adj: (R, N, N) bf16, rel_emb: (R, N, D) bf16, root: (N, D) f32, bias: (1, D) f32."""
    R, N, _ = adj.shape
    D = root.shape[1]
    return pl.pallas_call(
        _rgcn_kernel,
        out_shape=jax.ShapeDtypeStruct((N, D), jnp.bfloat16),
        grid=(N // tm, R, N // tk),
        in_specs=[
            pl.BlockSpec((1, tm, tk), lambda i, r, k: (r, i, k)),
            pl.BlockSpec((1, tk, D), lambda i, r, k: (r, k, 0)),
            pl.BlockSpec((tm, D), lambda i, r, k: (i, 0)),
            pl.BlockSpec((1, D), lambda i, r, k: (0, 0)),
        ],
        out_specs=pl.BlockSpec((tm, D), lambda i, r, k: (i, 0)),
        scratch_shapes=[pltpu.VMEM((tm, D), jnp.float32)],
        compiler_params=pltpu.CompilerParams(
            dimension_semantics=("parallel", "arbitrary", "arbitrary")),
    )(adj, rel_emb, root, bias)


# ----------------------------------------------------------------------------
# Kernel 2: sentiment-weighted self-attention over a user's entity embeddings.
#   logits = (tanh(H @ A) @ b) * sent   (masked softmax over entities)
#   user_rep = sum_l attn_l * H_l       (zeros if every entity is pad)
# The batched matmul is flattened to one (B*L, D) @ (D, D) MXU call.
# TODO(synk): add a row-tiled grid over B*L once the batch grows beyond a few hundred.
# ----------------------------------------------------------------------------
def _user_attn_kernel(h_ref, mask_ref, sent_ref, a_ref, b_ref, out_ref):
    B, L, D = h_ref.shape
    h = h_ref[...]                                             # (B, L, D) bf16
    t = jnp.tanh(jnp.dot(h.reshape(B * L, D), a_ref[...],
                         preferred_element_type=jnp.float32))
    t = t.reshape(B, L, D)
    e = jnp.sum(t * b_ref[...][None, :, :], axis=-1)           # (B, L)
    e = e * sent_ref[...]
    mask = mask_ref[...]
    e = jnp.where(mask > 0, e, jnp.float32(-1e30))
    m = jnp.max(e, axis=-1, keepdims=True)
    p = jnp.exp(e - m) * mask
    denom = jnp.sum(p, axis=-1, keepdims=True)
    attn = p / jnp.maximum(denom, jnp.float32(1e-9))           # all-pad row -> zero attn
    out_ref[...] = jnp.sum(attn[:, :, None] * h.astype(jnp.float32), axis=1)


def user_self_attention(h, mask, sent, a, bvec):
    B, _, D = h.shape
    vmem = pl.BlockSpec(memory_space=pltpu.MemorySpace.VMEM)
    return pl.pallas_call(
        _user_attn_kernel,
        out_shape=jax.ShapeDtypeStruct((B, D), jnp.float32),
        in_specs=[vmem] * 5,
        out_specs=vmem,
    )(h, mask, sent, a, bvec)


# ----------------------------------------------------------------------------
# Kernel 3: rec_scores = user_rep @ kg^T + bias, tiled over N with an online
# logsumexp for the per-row cross-entropy.  kg arrives untransposed as (tn, D)
# blocks; the contraction uses dot_general dims (((1,),(1,)),((),())) so the
# "transpose" happens inside the MXU and N stays on the lane axis of the output.
# Labels arrive as (B, 1) int32 — no dense one-hot.
# ----------------------------------------------------------------------------
def _rec_score_kernel(u_ref, kg_ref, bias_ref, labels_ref,
                      scores_ref, loss_ref, m_sc, l_sc, lab_sc):
    j = pl.program_id(0)
    nt = pl.num_programs(0)
    tn = scores_ref.shape[1]

    @pl.when(j == 0)
    def _():
        m_sc[...] = jnp.full_like(m_sc, -jnp.inf)
        l_sc[...] = jnp.zeros_like(l_sc)
        lab_sc[...] = jnp.zeros_like(lab_sc)

    scores = jax.lax.dot_general(
        u_ref[...], kg_ref[...], (((1,), (1,)), ((), ())),
        preferred_element_type=jnp.float32) + bias_ref[...]          # (B, tn)
    scores_ref[...] = scores

    # label logit from the tile that contains the label column
    col = j * tn + jax.lax.broadcasted_iota(jnp.int32, scores.shape, 1)
    is_label = col == labels_ref[...]                                # (B, tn)
    lab_sc[...] += jnp.sum(jnp.where(is_label, scores, 0.0),
                           axis=-1, keepdims=True)

    # online logsumexp (padded columns carry bias=-1e30 -> exp underflows to 0)
    m_new = jnp.maximum(m_sc[...], jnp.max(scores, axis=-1, keepdims=True))
    l_sc[...] = (l_sc[...] * jnp.exp(m_sc[...] - m_new)
                 + jnp.sum(jnp.exp(scores - m_new), axis=-1, keepdims=True))
    m_sc[...] = m_new

    @pl.when(j == nt - 1)
    def _():
        lse = m_sc[...] + jnp.log(l_sc[...])
        loss_ref[...] = jnp.broadcast_to(lse - lab_sc[...], loss_ref.shape)


def rec_scores_and_loss(user_rep, kg, rec_bias, labels, tn):
    """user_rep: (B, D) bf16, kg: (N, D) bf16, rec_bias: (1, N) f32, labels: (B, 1) i32."""
    B, D = user_rep.shape
    N = kg.shape[0]
    nsteps = N // tn
    # Deepen buffering on the only large input stream once there are enough steps.
    if nsteps >= 3:
        kg_spec = pl.BlockSpec((tn, D), lambda j: (j, 0),
                               pipeline_mode=pl.Buffered(3))
    else:
        kg_spec = pl.BlockSpec((tn, D), lambda j: (j, 0))
    return pl.pallas_call(
        _rec_score_kernel,
        out_shape=(jax.ShapeDtypeStruct((B, N), jnp.float32),
                   jax.ShapeDtypeStruct((B, 128), jnp.float32)),
        grid=(nsteps,),
        in_specs=[
            pl.BlockSpec((B, D), lambda j: (0, 0)),
            kg_spec,
            pl.BlockSpec((1, tn), lambda j: (0, j)),
            pl.BlockSpec((B, 1), lambda j: (0, 0)),
        ],
        out_specs=(pl.BlockSpec((B, tn), lambda j: (0, j)),
                   pl.BlockSpec((B, 128), lambda j: (0, 0))),
        scratch_shapes=[pltpu.VMEM((B, 1), jnp.float32),
                        pltpu.VMEM((B, 1), jnp.float32),
                        pltpu.VMEM((B, 1), jnp.float32)],
        compiler_params=pltpu.CompilerParams(
            dimension_semantics=("arbitrary",)),
    )(user_rep, kg, rec_bias, labels)


# ----------------------------------------------------------------------------
# Full forward (glue in plain JAX: basis composition, tile-aligned N / batch
# padding, dense adjacency, gather of user entities, mean of the loss).
# ----------------------------------------------------------------------------
def rec_model_forward(params, adj, entity_ids, ent_sent, labels, pad_entity_id):
    N, D = params['root'].shape
    nb = params['basis'].shape[0]
    B, L = entity_ids.shape

    # Tile selection (all 128 * 2^k) and padding so every tile divides N_pad.
    tn = _pow2_tile(N, 8192)      # kernel-3 column tile (kg tile ~ tn*D*2 B -> tiny)
    tm = _pow2_tile(N, 1024)      # kernel-1 output-row tile
    tk = _pow2_tile(N, 512)       # kernel-1 contraction tile (bounds VMEM, not N)
    N_pad = _round_up(N, max(tm, tk, tn))
    B_pad = _round_up(B, 8)       # sublane-dense batch for kernels 2/3

    # Basis decomposition: W_r = sum_b comp[r, b] * basis[b].  D stays un-padded (=32).
    basis_p = jnp.pad(params['basis'], ((0, 0), (0, N_pad - N), (0, 0)))
    rel_emb = (params['comp'] @ basis_p.reshape(nb, N_pad * D)).reshape(N_pad and -1, N_pad, D)
    adj_p = jnp.pad(adj, ((0, 0), (0, N_pad - N), (0, N_pad - N)))
    root_p = jnp.pad(params['root'], ((0, N_pad - N), (0, 0)))

    kg = rgcn_encode(adj_p.astype(jnp.bfloat16), rel_emb.astype(jnp.bfloat16),
                     root_p, params['rgcn_bias'], tm, tk)      # (N_pad, D) bf16
    # NOTE: padded kg rows (>= N) equal rgcn_bias; never gathered, and their score
    # columns are killed by the -1e30 rec_bias padding + the scores[:, :N] slice.

    # User attention over gathered entity embeddings (padded batch rows are all-pad
    # users and therefore produce a zero user_rep, matching the reference semantics).
    ids_p = jnp.pad(entity_ids, ((0, B_pad - B), (0, 0)),
                    constant_values=pad_entity_id)
    sent_p = jnp.pad(ent_sent, ((0, B_pad - B), (0, 0)))
    mask = (ids_p != pad_entity_id).astype(jnp.float32)
    h = jnp.take(kg, ids_p, axis=0)                            # (B_pad, L, D) gather (glue)
    user_rep = user_self_attention(
        h, mask, sent_p, params['attn_a'].astype(jnp.bfloat16),
        params['attn_b'])                                      # (B_pad, D) f32

    # Scores + CE loss.  Pad rec_bias with -1e30 so padded entity columns vanish
    # from the logsumexp; pad labels for the dummy batch rows (their loss is ignored).
    rec_bias_p = jnp.full((1, N_pad), -1e30, jnp.float32)
    rec_bias_p = rec_bias_p.at[:, :N].set(params['rec_bias'])
    labels_p = jnp.pad(labels.astype(jnp.int32), (0, B_pad - B))[:, None]

    scores_p, loss_rows = rec_scores_and_loss(
        user_rep.astype(jnp.bfloat16), kg, rec_bias_p, labels_p, tn)
    rec_scores = scores_p[:B, :N]
    rec_loss = jnp.mean(loss_rows[:B, 0])                      # CrossEntropyLoss(mean)
    return rec_scores, rec_loss


# ----------------------------------------------------------------------------
# Pure-JAX f32 reference for a correctness sanity check.
# ----------------------------------------------------------------------------
def reference_forward(params, adj, entity_ids, ent_sent, labels, pad_entity_id):
    N, D = params['root'].shape
    nb = params['basis'].shape[0]
    R = params['comp'].shape[0]
    rel_emb = (params['comp'] @ params['basis'].reshape(nb, N * D)).reshape(R, N, D)
    kg = params['root'] + params['rgcn_bias'] + jnp.einsum('rij,rjd->id', adj, rel_emb)

    mask = (entity_ids != pad_entity_id).astype(jnp.float32)
    h = kg[entity_ids]
    t = jnp.tanh(jnp.einsum('bld,de->ble', h, params['attn_a']))
    e = jnp.sum(t * params['attn_b'], axis=-1) * ent_sent
    e = jnp.where(mask > 0, e, -1e30)
    m = jnp.max(e, axis=-1, keepdims=True)
    p = jnp.exp(e - m) * mask
    attn = p / jnp.maximum(jnp.sum(p, axis=-1, keepdims=True), 1e-9)
    user = jnp.sum(attn[..., None] * h, axis=1)

    scores = user @ kg.T + params['rec_bias']
    lse = jax.scipy.special.logsumexp(scores, axis=-1)
    loss = jnp.mean(lse - scores[jnp.arange(scores.shape[0]), labels])
    return scores, loss


if __name__ == "__main__":
    # Small synthetic sizes consistent with the module's constructor.
    n_entity, kg_emb_dim = 64, 32
    num_relations, num_bases = 3, 2
    B, L, E = 4, 8, 128          # batch, max entities per user, num edges
    pad_entity_id = 0

    key = jax.random.PRNGKey(0)
    keys = jax.random.split(key, 10)
    s = 0.1
    params = dict(
        basis=s * jax.random.normal(keys[0], (num_bases, n_entity, kg_emb_dim), jnp.float32),
        comp=s * jax.random.normal(keys[1], (num_relations, num_bases), jnp.float32),
        root=s * jax.random.normal(keys[2], (n_entity, kg_emb_dim), jnp.float32),
        rgcn_bias=s * jax.random.normal(keys[3], (1, kg_emb_dim), jnp.float32),
        attn_a=s * jax.random.normal(keys[4], (kg_emb_dim, kg_emb_dim), jnp.float32),
        attn_b=s * jax.random.normal(keys[5], (1, kg_emb_dim), jnp.float32),
        rec_bias=s * jax.random.normal(keys[6], (1, n_entity), jnp.float32),
    )

    # edge_index / edge_type -> normalized dense per-relation adjacency (glue).
    src = jax.random.randint(keys[7], (E,), 0, n_entity)
    dst = jax.random.randint(keys[8], (E,), 0, n_entity)
    etype = jax.random.randint(keys[9], (E,), 0, num_relations)
    adj = jnp.zeros((num_relations, n_entity, n_entity), jnp.float32)
    adj = adj.at[etype, dst, src].add(1.0)
    deg = jnp.sum(adj, axis=-1, keepdims=True)
    adj = adj / jnp.maximum(deg, 1.0)        # mean aggregation per relation

    # batch['entity'] (padded with pad_entity_id), sentiment weights, labels.
    k2 = jax.random.split(jax.random.PRNGKey(1), 3)
    entity_ids = jax.random.randint(k2[0], (B, L), 1, n_entity)
    drop = jax.random.bernoulli(k2[1], 0.3, (B, L))
    entity_ids = jnp.where(drop, pad_entity_id, entity_ids)
    entity_ids = entity_ids.at[0].set(pad_entity_id)   # one all-pad user -> zero user_rep
    ent_sent = jax.random.uniform(k2[2], (B, L), jnp.float32, 0.2, 1.0)
    labels = jax.random.randint(jax.random.PRNGKey(2), (B,), 0, n_entity)

    scores, loss = rec_model_forward(params, adj, entity_ids, ent_sent,
                                     labels, pad_entity_id)
    jax.block_until_ready((scores, loss))

    ref_scores, ref_loss = reference_forward(params, adj, entity_ids, ent_sent,
                                             labels, pad_entity_id)
    # bf16 input streams -> compare against the f32 reference with loosened tolerance
    np.testing.assert_allclose(np.asarray(scores), np.asarray(ref_scores),
                               rtol=2e-2, atol=2e-2)
    np.testing.assert_allclose(float(loss), float(ref_loss), rtol=2e-2, atol=2e-2)

    print("KERNEL_OK")
</pallas_src>

<mosaic_0001>
module attributes {stable_mosaic.version = 11 : i64} {
  func.func @_rgcn_kernel(%arg0: i32, %arg1: i32, %arg2: i32, %arg3: memref<1x128x128xbf16, #tpu.memory_space<vmem>>, %arg4: memref<1x128x32xbf16, #tpu.memory_space<vmem>>, %arg5: memref<128x32xf32, #tpu.memory_space<vmem>>, %arg6: memref<1x32xf32, #tpu.memory_space<vmem>>, %arg7: memref<128x32xbf16, #tpu.memory_space<vmem>>, %arg8: memref<128x32xf32, #tpu.memory_space<vmem>>) attributes {dimension_semantics = [#tpu.dimension_semantics<parallel>, #tpu.dimension_semantics<arbitrary>, #tpu.dimension_semantics<arbitrary>], iteration_bounds = array<i64: 1, 3, 1>, scalar_prefetch = 0 : i64, scratch_operands = 1 : i64, tpu.core_type = #tpu.core_type<tc>, window_params = [{transform_indices = @transform_0, window_bounds = array<i64: 1, 128, 128>}, {transform_indices = @transform_1, window_bounds = array<i64: 1, 128, 32>}, {transform_indices = @transform_2, window_bounds = array<i64: 128, 32>}, {pipeline_mode = #tpu.pipeline_mode<synchronous>, transform_indices = @transform_3, window_bounds = array<i64: 1, 32>}, {transform_indices = @transform_4, window_bounds = array<i64: 128, 32>}]} {
    %c0_i32 = arith.constant 0 : i32
    %0 = arith.cmpi eq, %arg1, %c0_i32 : i32
    %c0_i32_0 = arith.constant 0 : i32
    %1 = arith.cmpi eq, %arg2, %c0_i32_0 : i32
    %2 = arith.andi %0, %1 : i1
    %3 = arith.extui %2 : i1 to i32
    %c0_i32_1 = arith.constant 0 : i32
    %4 = arith.cmpi ne, %3, %c0_i32_1 : i32
    scf.if %4 {
      %c0_13 = arith.constant 0 : index
      %c0_14 = arith.constant 0 : index
      %18 = vector.load %arg5[%c0_13, %c0_14] : memref<128x32xf32, #tpu.memory_space<vmem>>, vector<128x32xf32>
      %c0_15 = arith.constant 0 : index
      %c0_16 = arith.constant 0 : index
      %19 = vector.load %arg6[%c0_15, %c0_16] : memref<1x32xf32, #tpu.memory_space<vmem>>, vector<1x32xf32>
      %20 = vector.broadcast %19 : vector<1x32xf32> to vector<128x32xf32>
      %21 = arith.addf %18, %20 : vector<128x32xf32>
      %c0_17 = arith.constant 0 : index
      %c0_18 = arith.constant 0 : index
      %22 = vector.load %arg8[%c0_17, %c0_18] : memref<128x32xf32, #tpu.memory_space<vmem>>, vector<128x32xf32>
      tpu.vector_store %arg8[%c0_17, %c0_18], %21 {strides = array<i32>} : memref<128x32xf32, #tpu.memory_space<vmem>>, vector<128x32xf32>,
    } else {
    }
    %c0 = arith.constant 0 : index
    %c0_2 = arith.constant 0 : index
    %5 = vector.load %arg8[%c0, %c0_2] : memref<128x32xf32, #tpu.memory_space<vmem>>, vector<128x32xf32>
    %c0_3 = arith.constant 0 : index
    %c0_4 = arith.constant 0 : index
    %c0_5 = arith.constant 0 : index
    %6 = vector.load %arg3[%c0_3, %c0_4, %c0_5] : memref<1x128x128xbf16, #tpu.memory_space<vmem>>, vector<1x128x128xbf16>
    %7 = vector.shape_cast %6 : vector<1x128x128xbf16> to vector<128x128xbf16>
    %c0_6 = arith.constant 0 : index
    %c0_7 = arith.constant 0 : index
    %c0_8 = arith.constant 0 : index
    %8 = vector.load %arg4[%c0_6, %c0_7, %c0_8] : memref<1x128x32xbf16, #tpu.memory_space<vmem>>, vector<1x128x32xbf16>
    %9 = vector.shape_cast %8 : vector<1x128x32xbf16> to vector<128x32xbf16>
    %cst = arith.constant dense<0.000000e+00> : vector<128x32xf32>
    %10 = tpu.matmul %7, %9, %cst {dimension_numbers = #tpu.dot_dimension_numbers<[1], [0], [0], [1], [0, 0, 1, 1], [], []>} : vector<128x128xbf16>, vector<128x32xbf16>, vector<128x32xf32> -> vector<128x32xf32>
    %11 = arith.addf %5, %10 : vector<128x32xf32>
    %c0_9 = arith.constant 0 : index
    %c0_10 = arith.constant 0 : index
    %12 = vector.load %arg8[%c0_9, %c0_10] : memref<128x32xf32, #tpu.memory_space<vmem>>, vector<128x32xf32>
    tpu.vector_store %arg8[%c0_9, %c0_10], %11 {strides = array<i32>} : memref<128x32xf32, #tpu.memory_space<vmem>>, vector<128x32xf32>,
    %c2_i32 = arith.constant 2 : i32
    %13 = arith.cmpi eq, %arg1, %c2_i32 : i32
    %c0_i32_11 = arith.constant 0 : i32
    %14 = arith.cmpi eq, %arg2, %c0_i32_11 : i32
    %15 = arith.andi %13, %14 : i1
    %16 = arith.extui %15 : i1 to i32
    %c0_i32_12 = arith.constant 0 : i32
    %17 = arith.cmpi ne, %16, %c0_i32_12 : i32
    scf.if %17 {
      %c0_13 = arith.constant 0 : index
      %c0_14 = arith.constant 0 : index
      %18 = vector.load %arg8[%c0_13, %c0_14] : memref<128x32xf32, #tpu.memory_space<vmem>>, vector<128x32xf32>
      %19 = arith.truncf %18 : vector<128x32xf32> to vector<128x32xbf16>
      %c0_15 = arith.constant 0 : index
      %c0_16 = arith.constant 0 : index
      %20 = vector.load %arg7[%c0_15, %c0_16] : memref<128x32xbf16, #tpu.memory_space<vmem>>, vector<128x32xbf16>
      tpu.vector_store %arg7[%c0_15, %c0_16], %19 {strides = array<i32>} : memref<128x32xbf16, #tpu.memory_space<vmem>>, vector<128x32xbf16>,
    } else {
    }
    return
  }
  func.func @transform_0(%arg0: i32, %arg1: i32, %arg2: i32) -> (i32, i32, i32) {
    %c0_i32 = arith.constant 0 : i32
    return %arg1, %arg0, %arg2 : i32, i32, i32
  }
  func.func @transform_1(%arg0: i32, %arg1: i32, %arg2: i32) -> (i32, i32, i32) {
    %c0_i32 = arith.constant 0 : i32
    %c0_i32_0 = arith.constant 0 : i32
    return %arg1, %arg2, %c0_i32 : i32, i32, i32
  }
  func.func @transform_2(%arg0: i32, %arg1: i32, %arg2: i32) -> (i32, i32) {
    %c0_i32 = arith.constant 0 : i32
    %c0_i32_0 = arith.constant 0 : i32
    return %arg0, %c0_i32 : i32, i32
  }
  func.func @transform_3(%arg0: i32, %arg1: i32, %arg2: i32) -> (i32, i32) {
    %c0_i32 = arith.constant 0 : i32
    %c0_i32_0 = arith.constant 0 : i32
    %c0_i32_1 = arith.constant 0 : i32
    return %c0_i32, %c0_i32_0 : i32, i32
  }
  func.func @transform_4(%arg0: i32, %arg1: i32, %arg2: i32) -> (i32, i32) {
    %c0_i32 = arith.constant 0 : i32
    %c0_i32_0 = arith.constant 0 : i32
    return %arg0, %c0_i32 : i32, i32
  }
}

</mosaic_0001>

<llo_original>
// kernel: tpu_custom_call.1
$region0: #{tpu_custom_call.1}
  #allocation0 [shape = 'u32[]', space=smem, size = 0x4, offset = 0x4, fixed_abs, tag = 'smem constant byte address 0x4 - core index']
  #allocation1 [shape = 'u32[144,128]{1,0:T(1,128)}', space=vmem, size = 0x12000, scoped, tag = 'internal scratch']
  #allocation2 [shape = 'f32[128,32]{1,0:T(8,128)}', space=vmem, size = 0x10000, scoped, tag = 'scratch operand']
  %s0 = inlined_call_operand.vmem [shape: bf16[3,128,128], index: 0, kind: input, shape index: {}]
  %s1 = inlined_call_operand.vmem [shape: bf16[3,128,32], index: 1, kind: input, shape index: {}]
  %s2 = inlined_call_operand.vmem [shape: f32[128,32], index: 2, kind: input, shape index: {}]
  %s3 = inlined_call_operand.vmem [shape: f32[1,32], index: 3, kind: input, shape index: {}]
  %s4 = inlined_call_operand.vmem [shape: bf16[128,32], index: 4, kind: output, shape index: {}]
  %s5 = sld [smem:[#allocation0]]
  $region57: #{tpu_custom_call.1} parent=0
    _
  %s7 = ssub.s32 1, %s5
  %s8 = scalar_select 0, %s7, %s5
  loop: start=0, step=1, limit=5
  $region2: #{tpu_custom_call.1} parent=0 // loop_pre_header
    _
  $region3: #{tpu_custom_call.1} parent=0 // loop_header
    %s10 = sphi 0, %s14
    %p11 = scmp.ge.s32.totalorder %s10, 5
    %s17 = sphi 0, %s36
    %s18 = sphi 0, %s32
    %s19 = sphi 0, %s28
    %s20 = sphi 0, %s17
    %s21 = sphi 0, %s18
    %s22 = sphi 0, %s19
    %s23 = sphi 0, %s20
    %s24 = sphi 0, %s21
    %s25 = sphi 0, %s22
    %s43 = sphi 0, %s45
    %s46 = sphi 0, %s43
    %s47 = sphi 0, %s46
    %s63 = sphi 0, %s47
    %s71 = sphi 0, %s73
    %s74 = sphi 0, %s71
    %s75 = sphi 0, %s74
    %s91 = sphi 0, %s75
    %s97 = sphi 0, %s99
    %s100 = sphi 0, %s97
    %s101 = sphi 0, %s100
    %s117 = sphi 0, %s101
    %s121 = sphi 0, %s121
    %s123 = sphi 0, %s121
    %s124 = sphi 0, %s123
    %s138 = sphi 0, %s124
    %s144 = sphi 0, %s146
    %s147 = sphi 0, %s144
    %s148 = sphi 0, %s147
    %s164 = sphi 0, %s148
  $region4: #{tpu_custom_call.1} parent=0 // loop_header_branch
    %13 = sbr.rel (%p11) target = $region8
  $region5: #{tpu_custom_call.1} parent=0 // loop_body
    %s15 = ssub.s32 %s10, 1
    %s16 = ssub.s32 %s10, 2
    %s26 = sadd.s32 1, %s19
    %p27 = scmp.ge.s32.totalorder %s26, 1
    %s28 = scalar_select %p27, 0, %s26
    %s29 = sadd.s32 1, %s18
    %s30 = scalar_select %p27, %s29, %s18
    %p31 = scmp.ge.s32.totalorder %s30, 3
    %s32 = scalar_select %p31, 0, %s30
    %s33 = sadd.s32 1, %s17
    %s34 = scalar_select %p31, %s33, %s17
    %p35 = scmp.ge.s32.totalorder %s34, 1
    %s36 = scalar_select %p35, 0, %s34
    %s37 = ssub.s32 %s18, %s32
    %s38 = ssub.s32 %s17, %s36
    %s39 = sor.u32 %s37, %s38
    %s40 = ssub.s32 %s19, %s28
    %s41 = sor.u32 %s39, %s40
    %p42 = scmp.eq.s32.totalorder %s41, 0
    %s44 = sadd.s32 %s43, 1
    %s45 = scalar_select %p42, %s43, %s44
    %p48 = pneg %p42
    %p49 = scmp.eq.s32.totalorder %s10, 2
    %p50 = por %p48, %p49
    %p51 = scmp.ne.s32.totalorder %s43, %s46
    %p52 = scmp.eq.s32.totalorder %s10, 0
    %p53 = por %p51, %p52
    %p54 = scmp.ne.s32.totalorder %s43, %s46
    %p55 = scmp.eq.s32.totalorder %s15, 2
    %p56 = por %p54, %p55
    %p57 = scmp.ne.s32.totalorder %s46, %s47
    %p58 = scmp.eq.s32.totalorder %s15, 0
    %p59 = por %p57, %p58
    %p60 = scmp.ne.s32.totalorder %s46, %s47
    %p61 = scmp.eq.s32.totalorder %s16, 2
    %p62 = por %p60, %p61
    %p64 = scmp.ne.s32.totalorder %s47, %s63
    %p65 = scmp.eq.s32.totalorder %s16, 0
    %p66 = por %p64, %p65
    %s67 = ssub.s32 %s18, %s32
    %s68 = ssub.s32 %s19, %s28
    %s69 = sor.u32 %s67, %s68
    %p70 = scmp.eq.s32.totalorder %s69, 0
    %s72 = sadd.s32 %s71, 1
    %s73 = scalar_select %p70, %s71, %s72
    %p76 = pneg %p70
    %p77 = scmp.eq.s32.totalorder %s10, 2
    %p78 = por %p76, %p77
    %p79 = scmp.ne.s32.totalorder %s71, %s74
    %p80 = scmp.eq.s32.totalorder %s10, 0
    %p81 = por %p79, %p80
    %p82 = scmp.ne.s32.totalorder %s71, %s74
    %p83 = scmp.eq.s32.totalorder %s15, 2
    %p84 = por %p82, %p83
    %p85 = scmp.ne.s32.totalorder %s74, %s75
    %p86 = scmp.eq.s32.totalorder %s15, 0
    %p87 = por %p85, %p86
    %p88 = scmp.ne.s32.totalorder %s74, %s75
    %p89 = scmp.eq.s32.totalorder %s16, 2
    %p90 = por %p88, %p89
    %p92 = scmp.ne.s32.totalorder %s75, %s91
    %p93 = scmp.eq.s32.totalorder %s16, 0
    %p94 = por %p92, %p93
    %s95 = ssub.s32 %s17, %s36
    %p96 = scmp.eq.s32.totalorder %s95, 0
    %s98 = sadd.s32 %s97, 1
    %s99 = scalar_select %p96, %s97, %s98
    %p102 = pneg %p96
    %p103 = scmp.eq.s32.totalorder %s10, 2
    %p104 = por %p102, %p103
    %p105 = scmp.ne.s32.totalorder %s97, %s100
    %p106 = scmp.eq.s32.totalorder %s10, 0
    %p107 = por %p105, %p106
    %p108 = scmp.ne.s32.totalorder %s97, %s100
    %p109 = scmp.eq.s32.totalorder %s15, 2
    %p110 = por %p108, %p109
    %p111 = scmp.ne.s32.totalorder %s100, %s101
    %p112 = scmp.eq.s32.totalorder %s15, 0
    %p113 = por %p111, %p112
    %p114 = scmp.ne.s32.totalorder %s100, %s101
    %p115 = scmp.eq.s32.totalorder %s16, 2
    %p116 = por %p114, %p115
    %p118 = scmp.ne.s32.totalorder %s101, %s117
    %p119 = scmp.eq.s32.totalorder %s16, 0
    %p120 = por %p118, %p119
    %s122 = sadd.s32 %s121, 1
    %p125 = scmp.eq.s32.totalorder %s10, 2
    %p126 = scmp.ne.s32.totalorder %s121, %s123
    %p127 = scmp.eq.s32.totalorder %s10, 0
    %p128 = por %p126, %p127
    %p129 = scmp.ne.s32.totalorder %s121, %s123
    %p130 = scmp.eq.s32.totalorder %s15, 2
    %p131 = por %p129, %p130
    %p132 = scmp.ne.s32.totalorder %s123, %s124
    %p133 = scmp.eq.s32.totalorder %s15, 0
    %p134 = por %p132, %p133
    %p135 = scmp.ne.s32.totalorder %s123, %s124
    %p136 = scmp.eq.s32.totalorder %s16, 2
    %p137 = por %p135, %p136
    %p139 = scmp.ne.s32.totalorder %s124, %s138
    %p140 = scmp.eq.s32.totalorder %s16, 0
    %p141 = por %p139, %p140
    %s142 = ssub.s32 %s17, %s36
    %p143 = scmp.eq.s32.totalorder %s142, 0
    %s145 = sadd.s32 %s144, 1
    %s146 = scalar_select %p143, %s144, %s145
    %p149 = pneg %p143
    %p150 = scmp.eq.s32.totalorder %s10, 2
    %p151 = por %p149, %p150
    %p152 = scmp.ne.s32.totalorder %s144, %s147
    %p153 = scmp.eq.s32.totalorder %s10, 0
    %p154 = por %p152, %p153
    %p155 = scmp.ne.s32.totalorder %s144, %s147
    %p156 = scmp.eq.s32.totalorder %s15, 2
    %p157 = por %p155, %p156
    %p158 = scmp.ne.s32.totalorder %s147, %s148
    %p159 = scmp.eq.s32.totalorder %s15, 0
    %p160 = por %p158, %p159
    %p161 = scmp.ne.s32.totalorder %s147, %s148
    %p162 = scmp.eq.s32.totalorder %s16, 2
    %p163 = por %p161, %p162
    %p165 = scmp.ne.s32.totalorder %s148, %s164
    %p166 = scmp.eq.s32.totalorder %s16, 0
    %p167 = por %p165, %p166
    %p168 = scmp.le.s32.totalorder 1, %s10
    %p169 = scmp.lt.s32.totalorder %s10, 4
    %p170 = pnand %p168, %p169
    %p171 = pneg %p170
    // Predicated region
    $region9: #{tpu_custom_call.1} parent=5 // pred_check
      _
    $region10: #{tpu_custom_call.1} parent=5 // pred_check_branch
      %173 = sbr.rel (%p170) target = $region12
    $region11: #{tpu_custom_call.1} parent=5 // pred_region
      %s174 = ssub.s32 %s10, 1
      // Predicated region
      $region13: #{tpu_custom_call.1} parent=11 // pred_check
        %p175 = pneg %p113
      $region14: #{tpu_custom_call.1} parent=11 // pred_check_branch
        %177 = sbr.rel (%p175) target = $region16
      $region15: #{tpu_custom_call.1} parent=11 // pred_region
        %s178 = smul.u32 16, %s20
        %p179 = scmp.lt.s32.totalorder %s178, 15
        %s180 = scalar_select %p179, %s178, 15
        %s181 = smul.addr %s180, 8
        %s182 = scalar_lea.vmem %s2, %s181
        %s183 = smul.u32 16, %s20
      $region16: #{tpu_custom_call.1} parent=11 // pred_fallthru
        _
      // Predicated region
      $region17: #{tpu_custom_call.1} parent=11 // pred_check
        %p184 = pneg %p134
      $region18: #{tpu_custom_call.1} parent=11 // pred_check_branch
        %186 = sbr.rel (%p184) target = $region20
      $region19: #{tpu_custom_call.1} parent=11 // pred_region
        _
      $region20: #{tpu_custom_call.1} parent=11 // pred_fallthru
        _
    $region12: #{tpu_custom_call.1} parent=5 // pred_fallthru
      _
    %p187 = scmp.lt.s32.totalorder %s10, 3
    // Predicated region
    $region21: #{tpu_custom_call.1} parent=5 // pred_check
      %p188 = pneg %p187
    $region22: #{tpu_custom_call.1} parent=5 // pred_check_branch
      %190 = sbr.rel (%p188) target = $region24
    $region23: #{tpu_custom_call.1} parent=5 // pred_region
      // Predicated region
      $region25: #{tpu_custom_call.1} parent=23 // pred_check
        %p191 = pneg %p53
      $region26: #{tpu_custom_call.1} parent=23 // pred_check_branch
        %193 = sbr.rel (%p191) target = $region28
      $region27: #{tpu_custom_call.1} parent=23 // pred_region
        %s194 = smul.u32 16, %s17
        %p195 = scmp.lt.s32.totalorder %s18, 2
        %s196 = scalar_select %p195, %s18, 2
        %p197 = scmp.lt.s32.totalorder %s194, 15
        %s198 = scalar_select %p197, %s194, 15
        %p199 = scmp.lt.s32.totalorder %s19, 0
        %s200 = scalar_select %p199, %s19, 0
        %s201 = sadd.s32 %s200, %s198
        %s202 = smul.addr %s196, 16
        %s203 = sadd.s32 %s201, %s202
        %s204 = smul.addr %s203, 4
        %s205 = scalar_lea.vmem %s0, %s204
        %s206 = smul.u32 16, %s17
      $region28: #{tpu_custom_call.1} parent=23 // pred_fallthru
        _
      // Predicated region
      $region29: #{tpu_custom_call.1} parent=23 // pred_check
        %p207 = pneg %p81
      $region30: #{tpu_custom_call.1} parent=23 // pred_check_branch
        %209 = sbr.rel (%p207) target = $region32
      $region31: #{tpu_custom_call.1} parent=23 // pred_region
        %s210 = smul.u32 16, %s19
        %p211 = scmp.lt.s32.totalorder %s18, 2
        %s212 = scalar_select %p211, %s18, 2
        %p213 = scmp.lt.s32.totalorder %s210, 15
        %s214 = scalar_select %p213, %s210, 15
        %s215 = smul.addr %s212, 16
        %s216 = sadd.s32 %s214, %s215
        %s217 = smul.addr %s216, 4
        %s218 = scalar_lea.vmem %s1, %s217
        %s219 = smul.u32 16, %s19
      $region32: #{tpu_custom_call.1} parent=23 // pred_fallthru
        _
    $region24: #{tpu_custom_call.1} parent=5 // pred_fallthru
      _
    %p220 = scmp.le.s32.totalorder 1, %s10
    %p221 = scmp.lt.s32.totalorder %s10, 4
    %p222 = pnand %p220, %p221
    %p223 = pneg %p222
    // Predicated region
    $region33: #{tpu_custom_call.1} parent=5 // pred_check
      _
    $region34: #{tpu_custom_call.1} parent=5 // pred_check_branch
      %225 = sbr.rel (%p222) target = $region36
    $region35: #{tpu_custom_call.1} parent=5 // pred_region
      %s226 = ssub.s32 %s10, 1
      %s227 = smul.u32 16, %s20
      %p228 = scmp.lt.s32.totalorder %s21, 2
      %s229 = scalar_select %p228, %s21, 2
      %p230 = scmp.lt.s32.totalorder %s227, 15
      %s231 = scalar_select %p230, %s227, 15
      %p232 = scmp.lt.s32.totalorder %s22, 0
      %s233 = scalar_select %p232, %s22, 0
      %s234 = sadd.s32 %s233, %s231
      %s235 = smul.addr %s229, 16
      %s236 = sadd.s32 %s234, %s235
      %s237 = smul.addr %s236, 4
      %s238 = scalar_lea.vmem %s0, %s237
      %p239 = pneg %p59
      %p240 = pneg %p56
      %s241 = smul.u32 16, %s22
      %p242 = scmp.lt.s32.totalorder %s21, 2
      %s243 = scalar_select %p242, %s21, 2
      %p244 = scmp.lt.s32.totalorder %s241, 15
      %s245 = scalar_select %p244, %s241, 15
      %s246 = smul.addr %s243, 16
      %s247 = sadd.s32 %s245, %s246
      %s248 = smul.addr %s247, 4
      %s249 = scalar_lea.vmem %s1, %s248
      %p250 = pneg %p87
      %p251 = pneg %p84
      %s252 = smul.u32 16, %s20
      %p253 = scmp.lt.s32.totalorder %s252, 15
      %s254 = scalar_select %p253, %s252, 15
      %s255 = smul.addr %s254, 8
      %s256 = scalar_lea.vmem %s2, %s255
      %p257 = pneg %p113
      %p258 = pneg %p110
      %p259 = pneg %p134
      %p260 = pneg %p131
      %p261 = pneg %p160
      %p262 = pneg %p157
      %s263 = smul.u32 16, %s20
      %p264 = scmp.lt.s32.totalorder %s263, 15
      %s265 = scalar_select %p264, %s263, 15
      %s266 = smul.addr %s265, 4
      %s267 = scalar_lea.vmem %s4, %s266
      %s268 = smul.u32 16, %s20
      %p269 = scmp.lt.s32.totalorder %s21, 2
      %s270 = scalar_select %p269, %s21, 2
      %p271 = scmp.lt.s32.totalorder %s268, 15
      %s272 = scalar_select %p271, %s268, 15
      %p273 = scmp.lt.s32.totalorder %s22, 0
      %s274 = scalar_select %p273, %s22, 0
      %s275 = sadd.s32 %s274, %s272
      %s276 = smul.addr %s270, 16
      %s277 = sadd.s32 %s275, %s276
      %s278 = smul.addr %s277, 4
      %s279 = scalar_lea.vmem %s0, %s278
      %s280 = smul.u32 16, %s20
      %s281 = smul.u32 16, %s22
      %p282 = scmp.lt.s32.totalorder %s21, 2
      %s283 = scalar_select %p282, %s21, 2
      %p284 = scmp.lt.s32.totalorder %s281, 15
      %s285 = scalar_select %p284, %s281, 15
      %s286 = smul.addr %s283, 16
      %s287 = sadd.s32 %s285, %s286
      %s288 = smul.addr %s287, 4
      %s289 = scalar_lea.vmem %s1, %s288
      %s290 = smul.u32 16, %s22
      %s291 = smul.u32 16, %s20
      %p292 = scmp.lt.s32.totalorder %s291, 15
      %s293 = scalar_select %p292, %s291, 15
      %s294 = smul.addr %s293, 8
      %s295 = scalar_lea.vmem %s2, %s294
      %s296 = smul.u32 16, %s20
      %s297 = smul.u32 16, %s20
      %p298 = scmp.lt.s32.totalorder %s297, 15
      %s299 = scalar_select %p298, %s297, 15
      %s300 = smul.addr %s299, 4
      %s301 = scalar_lea.vmem %s4, %s300
      %s302 = smul.u32 16, %s20
      %p304 = scmp.eq.s32.totalorder %s21, 0
      %p305 = scmp.eq.s32.totalorder %s22, 0
      %p306 = pnand %p304, %p305
      %p307 = pneg %p306
      // Predicated region
      $region37: #{tpu_custom_call.1} parent=35 // pred_check
        _
      $region38: #{tpu_custom_call.1} parent=35 // pred_check_branch
        %309 = sbr.rel (%p306) target = $region40
      $region39: #{tpu_custom_call.1} parent=35 // pred_region
        %v310 = vld [vmem:[%s295] sm:$0xff]
        %v311 = vld [vmem:[%s295 + $0x8] sm:$0xff]
        %v312 = vld [vmem:[%s295 + $0x10] sm:$0xff]
        %v313 = vld [vmem:[%s295 + $0x18] sm:$0xff]
        %v314 = vld [vmem:[%s295 + $0x20] sm:$0xff]
        %v315 = vld [vmem:[%s295 + $0x28] sm:$0xff]
        %v316 = vld [vmem:[%s295 + $0x30] sm:$0xff]
        %v317 = vld [vmem:[%s295 + $0x38] sm:$0xff]
        %v318 = vld [vmem:[%s295 + $0x40] sm:$0xff]
        %v319 = vld [vmem:[%s295 + $0x48] sm:$0xff]
        %v320 = vld [vmem:[%s295 + $0x50] sm:$0xff]
        %v321 = vld [vmem:[%s295 + $0x58] sm:$0xff]
        %v322 = vld [vmem:[%s295 + $0x60] sm:$0xff]
        %v323 = vld [vmem:[%s295 + $0x68] sm:$0xff]
        %v324 = vld [vmem:[%s295 + $0x70] sm:$0xff]
        %v325 = vld [vmem:[%s295 + $0x78] sm:$0xff]
        %v326 = vld [vmem:[%s3] sm:$0x1]
        %v328 = vlaneseq
        %v329 = vshrl.u32 %v328, 7
        %v330 = vsub.s32 0, %v329
        %v331 = vrot.slane %v326, %v330
        %v333 = vadd.f32 %v310, %v331
        %v334 = vadd.f32 %v311, %v331
        %v335 = vadd.f32 %v312, %v331
        %v336 = vadd.f32 %v313, %v331
        %v337 = vadd.f32 %v314, %v331
        %v338 = vadd.f32 %v315, %v331
        %v339 = vadd.f32 %v316, %v331
        %v340 = vadd.f32 %v317, %v331
        %v341 = vadd.f32 %v318, %v331
        %v342 = vadd.f32 %v319, %v331
        %v343 = vadd.f32 %v320, %v331
        %v344 = vadd.f32 %v321, %v331
        %v345 = vadd.f32 %v322, %v331
        %v346 = vadd.f32 %v323, %v331
        %v347 = vadd.f32 %v324, %v331
        %v348 = vadd.f32 %v325, %v331
        %vm349 = vcmask 261120
        %350 = vst.msk [vmem:[#allocation2] sm:$0xff] %vm349, %v333
        %351 = vst.msk [vmem:[#allocation2 + $0x8] sm:$0xff] %vm349, %v334
        %352 = vst.msk [vmem:[#allocation2 + $0x10] sm:$0xff] %vm349, %v335
        %353 = vst.msk [vmem:[#allocation2 + $0x18] sm:$0xff] %vm349, %v336
        %354 = vst.msk [vmem:[#allocation2 + $0x20] sm:$0xff] %vm349, %v337
        %355 = vst.msk [vmem:[#allocation2 + $0x28] sm:$0xff] %vm349, %v338
        %356 = vst.msk [vmem:[#allocation2 + $0x30] sm:$0xff] %vm349, %v339
        %357 = vst.msk [vmem:[#allocation2 + $0x38] sm:$0xff] %vm349, %v340
        %358 = vst.msk [vmem:[#allocation2 + $0x40] sm:$0xff] %vm349, %v341
        %359 = vst.msk [vmem:[#allocation2 + $0x48] sm:$0xff] %vm349, %v342
        %360 = vst.msk [vmem:[#allocation2 + $0x50] sm:$0xff] %vm349, %v343
        %361 = vst.msk [vmem:[#allocation2 + $0x58] sm:$0xff] %vm349, %v344
        %362 = vst.msk [vmem:[#allocation2 + $0x60] sm:$0xff] %vm349, %v345
        %363 = vst.msk [vmem:[#allocation2 + $0x68] sm:$0xff] %vm349, %v346
        %364 = vst.msk [vmem:[#allocation2 + $0x70] sm:$0xff] %vm349, %v347
        %365 = vst.msk [vmem:[#allocation2 + $0x78] sm:$0xff] %vm349, %v348
      $region40: #{tpu_custom_call.1} parent=35 // pred_fallthru
        _
      %v366 = vld [vmem:[#allocation2] sm:$0xff]
      %v367 = vld [vmem:[#allocation2 + $0x8] sm:$0xff]
      %v368 = vld [vmem:[#allocation2 + $0x10] sm:$0xff]
      %v369 = vld [vmem:[#allocation2 + $0x18] sm:$0xff]
      %v370 = vld [vmem:[#allocation2 + $0x20] sm:$0xff]
      %v371 = vld [vmem:[#allocation2 + $0x28] sm:$0xff]
      %v372 = vld [vmem:[#allocation2 + $0x30] sm:$0xff]
      %v373 = vld [vmem:[#allocation2 + $0x38] sm:$0xff]
      %v374 = vld [vmem:[#allocation2 + $0x40] sm:$0xff]
      %v375 = vld [vmem:[#allocation2 + $0x48] sm:$0xff]
      %v376 = vld [vmem:[#allocation2 + $0x50] sm:$0xff]
      %v377 = vld [vmem:[#allocation2 + $0x58] sm:$0xff]
      %v378 = vld [vmem:[#allocation2 + $0x60] sm:$0xff]
      %v379 = vld [vmem:[#allocation2 + $0x68] sm:$0xff]
      %v380 = vld [vmem:[#allocation2 + $0x70] sm:$0xff]
      %v381 = vld [vmem:[#allocation2 + $0x78] sm:$0xff]
      %v382 = vld [vmem:[%s279] sm:$0xf]
      %v383 = vld [vmem:[%s279 + $0x4] sm:$0xf]
      %v384 = vld [vmem:[%s279 + $0x8] sm:$0xf]
      %v385 = vld [vmem:[%s279 + $0xc] sm:$0xf]
      %v386 = vld [vmem:[%s279 + $0x10] sm:$0xf]
      %v387 = vld [vmem:[%s279 + $0x14] sm:$0xf]
      %v388 = vld [vmem:[%s279 + $0x18] sm:$0xf]
      %v389 = vld [vmem:[%s279 + $0x1c] sm:$0xf]
      %v390 = vld [vmem:[%s279 + $0x20] sm:$0xf]
      %v391 = vld [vmem:[%s279 + $0x24] sm:$0xf]
      %v392 = vld [vmem:[%s279 + $0x28] sm:$0xf]
      %v393 = vld [vmem:[%s279 + $0x2c] sm:$0xf]
      %v394 = vld [vmem:[%s279 + $0x30] sm:$0xf]
      %v395 = vld [vmem:[%s279 + $0x34] sm:$0xf]
      %v396 = vld [vmem:[%s279 + $0x38] sm:$0xf]
      %v397 = vld [vmem:[%s279 + $0x3c] sm:$0xf]
      %v398 = vld [vmem:[%s289] sm:$0xf]
      %v399 = vld [vmem:[%s289 + $0x4] sm:$0xf]
      %v400 = vld [vmem:[%s289 + $0x8] sm:$0xf]
      %v401 = vld [vmem:[%s289 + $0xc] sm:$0xf]
      %v402 = vld [vmem:[%s289 + $0x10] sm:$0xf]
      %v403 = vld [vmem:[%s289 + $0x14] sm:$0xf]
      %v404 = vld [vmem:[%s289 + $0x18] sm:$0xf]
      %v405 = vld [vmem:[%s289 + $0x1c] sm:$0xf]
      %v406 = vld [vmem:[%s289 + $0x20] sm:$0xf]
      %v407 = vld [vmem:[%s289 + $0x24] sm:$0xf]
      %v408 = vld [vmem:[%s289 + $0x28] sm:$0xf]
      %v409 = vld [vmem:[%s289 + $0x2c] sm:$0xf]
      %v410 = vld [vmem:[%s289 + $0x30] sm:$0xf]
      %v411 = vld [vmem:[%s289 + $0x34] sm:$0xf]
      %v412 = vld [vmem:[%s289 + $0x38] sm:$0xf]
      %v413 = vld [vmem:[%s289 + $0x3c] sm:$0xf]
      %v430 = vunpack.c.l.b16 %v382
      %v431 = vunpack.c.l.b16 %v383
      %v432 = vunpack.c.l.b16 %v384
      %v433 = vunpack.c.l.b16 %v385
      %v434 = vunpack.c.l.b16 %v386
      %v435 = vunpack.c.l.b16 %v387
      %v436 = vunpack.c.l.b16 %v388
      %v437 = vunpack.c.l.b16 %v389
      %v438 = vunpack.c.l.b16 %v390
      %v439 = vunpack.c.l.b16 %v391
      %v440 = vunpack.c.l.b16 %v392
      %v441 = vunpack.c.l.b16 %v393
      %v442 = vunpack.c.l.b16 %v394
      %v443 = vunpack.c.l.b16 %v395
      %v444 = vunpack.c.l.b16 %v396
      %v445 = vunpack.c.l.b16 %v397
      %v446 = vpack.c.b16 %v431, %v430
      %v447 = vpack.c.b16 %v433, %v432
      %v448 = vpack.c.b16 %v435, %v434
      %v449 = vpack.c.b16 %v437, %v436
      %v450 = vpack.c.b16 %v439, %v438
      %v451 = vpack.c.b16 %v441, %v440
      %v452 = vpack.c.b16 %v443, %v442
      %v453 = vpack.c.b16 %v445, %v444
      %v478 = vunpack.c.l.b16 %v398
      %v479 = vunpack.c.l.b16 %v399
      %v480 = vunpack.c.l.b16 %v400
      %v481 = vunpack.c.l.b16 %v401
      %v482 = vunpack.c.l.b16 %v402
      %v483 = vunpack.c.l.b16 %v403
      %v484 = vunpack.c.l.b16 %v404
      %v485 = vunpack.c.l.b16 %v405
      %v486 = vunpack.c.l.b16 %v406
      %v487 = vunpack.c.l.b16 %v407
      %v488 = vunpack.c.l.b16 %v408
      %v489 = vunpack.c.l.b16 %v409
      %v490 = vunpack.c.l.b16 %v410
      %v491 = vunpack.c.l.b16 %v411
      %v492 = vunpack.c.l.b16 %v412
      %v493 = vunpack.c.l.b16 %v413
      %v494 = vpack.c.b16 %v479, %v478
      %v495 = vpack.c.b16 %v481, %v480
      %v496 = vpack.c.b16 %v483, %v482
      %v497 = vpack.c.b16 %v485, %v484
      %v498 = vpack.c.b16 %v487, %v486
      %v499 = vpack.c.b16 %v489, %v488
      %v500 = vpack.c.b16 %v491, %v490
      %v501 = vpack.c.b16 %v493, %v492
      %510 = vmatprep.subr.bf16.mxu0 0
      %511 = vmatpush1.bf16.msra.mxu0 %v501
      %512 = vmatprep.subr.bf16.mxu0 0
      %513 = vmatpush1.bf16.msra.mxu0 %v500
      %514 = vmatprep.subr.bf16.mxu0 0
      %515 = vmatpush1.bf16.msra.mxu0 %v499
      %516 = vmatprep.subr.bf16.mxu0 0
      %517 = vmatpush1.bf16.msra.mxu0 %v498
      %518 = vmatprep.subr.bf16.mxu0 0
      %519 = vmatpush1.bf16.msra.mxu0 %v497
      %520 = vmatprep.subr.bf16.mxu0 0
      %521 = vmatpush1.bf16.msra.mxu0 %v496
      %522 = vmatprep.subr.bf16.mxu0 0
      %523 = vmatpush1.bf16.msra.mxu0 %v495
      %524 = vmatprep.subr.bf16.mxu0 0
      %525 = vmatpush1.bf16.msra.mxu0 %v494
      %526 = vmatprep.subr.bf16.mxu0 0
      %527 = vmatpush2.bf16.msra.mxu0 0
      %528 = vmatprep.subr.bf16.mxu0 0
      %529 = vmatpush2.bf16.msra.mxu0 0
      %530 = vmatprep.subr.bf16.mxu0 0
      %531 = vmatpush2.bf16.msra.mxu0 0
      %532 = vmatprep.subr.bf16.mxu0 0
      %533 = vmatpush2.bf16.msra.mxu0 0
      %534 = vmatprep.subr.bf16.mxu0 0
      %535 = vmatpush2.bf16.msra.mxu0 0
      %536 = vmatprep.subr.bf16.mxu0 0
      %537 = vmatpush2.bf16.msra.mxu0 0
      %538 = vmatprep.subr.bf16.mxu0 0
      %539 = vmatpush2.bf16.msra.mxu0 0
      %540 = vmatprep.subr.bf16.mxu0 0
      %541 = vmatpush2.bf16.msra.mxu0 0
      %542 = vmatprep.mubr.bf16.mxu0 0
      %543 = vmatmul.mubr.bf16.gmra.mxu0 %v446
      %v544 = vpop.f32.mrf.mxu0
      %v545 = vadd.f32 0.0, %v544
      %v546 = vpop.f32.mrf.mxu0
      %v547 = vpop.f32.mrf.mxu0
      %v548 = vadd.f32 0.0, %v547
      %v549 = vpop.f32.mrf.mxu0
      %550 = vmatprep.mubr.bf16.mxu0 0
      %551 = vmatmul.mubr.bf16.gmra.mxu0 %v447
      %v552 = vpop.f32.mrf.mxu0
      %v553 = vadd.f32 0.0, %v552
      %v554 = vpop.f32.mrf.mxu0
      %v555 = vpop.f32.mrf.mxu0
      %v556 = vadd.f32 0.0, %v555
      %v557 = vpop.f32.mrf.mxu0
      %558 = vmatprep.mubr.bf16.mxu0 0
      %559 = vmatmul.mubr.bf16.gmra.mxu0 %v448
      %v560 = vpop.f32.mrf.mxu0
      %v561 = vadd.f32 0.0, %v560
      %v562 = vpop.f32.mrf.mxu0
      %v563 = vpop.f32.mrf.mxu0
      %v564 = vadd.f32 0.0, %v563
      %v565 = vpop.f32.mrf.mxu0
      %566 = vmatprep.mubr.bf16.mxu0 0
      %567 = vmatmul.mubr.bf16.gmra.mxu0 %v449
      %v568 = vpop.f32.mrf.mxu0
      %v569 = vadd.f32 0.0, %v568
      %v570 = vpop.f32.mrf.mxu0
      %v571 = vpop.f32.mrf.mxu0
      %v572 = vadd.f32 0.0, %v571
      %v573 = vpop.f32.mrf.mxu0
      %574 = vmatprep.mubr.bf16.mxu0 0
      %575 = vmatmul.mubr.bf16.gmra.mxu0 %v450
      %v576 = vpop.f32.mrf.mxu0
      %v577 = vadd.f32 0.0, %v576
      %v578 = vpop.f32.mrf.mxu0
      %v579 = vpop.f32.mrf.mxu0
      %v580 = vadd.f32 0.0, %v579
      %v581 = vpop.f32.mrf.mxu0
      %582 = vmatprep.mubr.bf16.mxu0 0
      %583 = vmatmul.mubr.bf16.gmra.mxu0 %v451
      %v584 = vpop.f32.mrf.mxu0
      %v585 = vadd.f32 0.0, %v584
      %v586 = vpop.f32.mrf.mxu0
      %v587 = vpop.f32.mrf.mxu0
      %v588 = vadd.f32 0.0, %v587
      %v589 = vpop.f32.mrf.mxu0
      %590 = vmatprep.mubr.bf16.mxu0 0
      %591 = vmatmul.mubr.bf16.gmra.mxu0 %v452
      %v592 = vpop.f32.mrf.mxu0
      %v593 = vadd.f32 0.0, %v592
      %v594 = vpop.f32.mrf.mxu0
      %v595 = vpop.f32.mrf.mxu0
      %v596 = vadd.f32 0.0, %v595
      %v597 = vpop.f32.mrf.mxu0
      %598 = vmatprep.mubr.bf16.mxu0 0
      %599 = vmatmul.mubr.bf16.gmra.mxu0 %v453
      %v600 = vpop.f32.mrf.mxu0
      %v601 = vadd.f32 0.0, %v600
      %v602 = vpop.f32.mrf.mxu0
      %v603 = vpop.f32.mrf.mxu0
      %v604 = vadd.f32 0.0, %v603
      %v605 = vpop.f32.mrf.mxu0
      %606 = vdwg.mxu0
      %v607 = vadd.f32 %v366, %v545
      %v608 = vadd.f32 %v367, %v548
      %v609 = vadd.f32 %v368, %v553
      %v610 = vadd.f32 %v369, %v556
      %v611 = vadd.f32 %v370, %v561
      %v612 = vadd.f32 %v371, %v564
      %v613 = vadd.f32 %v372, %v569
      %v614 = vadd.f32 %v373, %v572
      %v615 = vadd.f32 %v374, %v577
      %v616 = vadd.f32 %v375, %v580
      %v617 = vadd.f32 %v376, %v585
      %v618 = vadd.f32 %v377, %v588
      %v619 = vadd.f32 %v378, %v593
      %v620 = vadd.f32 %v379, %v596
      %v621 = vadd.f32 %v380, %v601
      %v622 = vadd.f32 %v381, %v604
      %vm623 = vcmask 261120
      %624 = vst.msk [vmem:[#allocation2] sm:$0xff] %vm623, %v607
      %625 = vst.msk [vmem:[#allocation2 + $0x8] sm:$0xff] %vm623, %v608
      %626 = vst.msk [vmem:[#allocation2 + $0x10] sm:$0xff] %vm623, %v609
      %627 = vst.msk [vmem:[#allocation2 + $0x18] sm:$0xff] %vm623, %v610
      %628 = vst.msk [vmem:[#allocation2 + $0x20] sm:$0xff] %vm623, %v611
      %629 = vst.msk [vmem:[#allocation2 + $0x28] sm:$0xff] %vm623, %v612
      %630 = vst.msk [vmem:[#allocation2 + $0x30] sm:$0xff] %vm623, %v613
      %631 = vst.msk [vmem:[#allocation2 + $0x38] sm:$0xff] %vm623, %v614
      %632 = vst.msk [vmem:[#allocation2 + $0x40] sm:$0xff] %vm623, %v615
      %633 = vst.msk [vmem:[#allocation2 + $0x48] sm:$0xff] %vm623, %v616
      %634 = vst.msk [vmem:[#allocation2 + $0x50] sm:$0xff] %vm623, %v617
      %635 = vst.msk [vmem:[#allocation2 + $0x58] sm:$0xff] %vm623, %v618
      %636 = vst.msk [vmem:[#allocation2 + $0x60] sm:$0xff] %vm623, %v619
      %637 = vst.msk [vmem:[#allocation2 + $0x68] sm:$0xff] %vm623, %v620
      %638 = vst.msk [vmem:[#allocation2 + $0x70] sm:$0xff] %vm623, %v621
      %639 = vst.msk [vmem:[#allocation2 + $0x78] sm:$0xff] %vm623, %v622
      %p640 = scmp.eq.s32.totalorder %s21, 2
      %p641 = pnand %p640, %p305
      %p642 = pneg %p641
      // Predicated region
      $region41: #{tpu_custom_call.1} parent=35 // pred_check
        _
      $region42: #{tpu_custom_call.1} parent=35 // pred_check_branch
        %644 = sbr.rel (%p641) target = $region44
      $region43: #{tpu_custom_call.1} parent=35 // pred_region
        %v645 = vld [vmem:[#allocation2] sm:$0xff]
        %v646 = vld [vmem:[#allocation2 + $0x8] sm:$0xff]
        %v647 = vld [vmem:[#allocation2 + $0x10] sm:$0xff]
        %v648 = vld [vmem:[#allocation2 + $0x18] sm:$0xff]
        %v649 = vld [vmem:[#allocation2 + $0x20] sm:$0xff]
        %v650 = vld [vmem:[#allocation2 + $0x28] sm:$0xff]
        %v651 = vld [vmem:[#allocation2 + $0x30] sm:$0xff]
        %v652 = vld [vmem:[#allocation2 + $0x38] sm:$0xff]
        %v653 = vld [vmem:[#allocation2 + $0x40] sm:$0xff]
        %v654 = vld [vmem:[#allocation2 + $0x48] sm:$0xff]
        %v655 = vld [vmem:[#allocation2 + $0x50] sm:$0xff]
        %v656 = vld [vmem:[#allocation2 + $0x58] sm:$0xff]
        %v657 = vld [vmem:[#allocation2 + $0x60] sm:$0xff]
        %v658 = vld [vmem:[#allocation2 + $0x68] sm:$0xff]
        %v659 = vld [vmem:[#allocation2 + $0x70] sm:$0xff]
        %v660 = vld [vmem:[#allocation2 + $0x78] sm:$0xff]
        %v661 = vpack.c.bf16 %v646, %v645
        %v662 = vpack.c.bf16 %v648, %v647
        %v663 = vpack.c.bf16 %v650, %v649
        %v664 = vpack.c.bf16 %v652, %v651
        %v665 = vpack.c.bf16 %v654, %v653
        %v666 = vpack.c.bf16 %v656, %v655
        %v667 = vpack.c.bf16 %v658, %v657
        %v668 = vpack.c.bf16 %v660, %v659
        %v677 = vunpack.c.l.b16 %v661
        %v678 = vunpack.c.h.b16 %v661
        %v679 = vunpack.c.l.b16 %v662
        %v680 = vunpack.c.h.b16 %v662
        %v681 = vunpack.c.l.b16 %v663
        %v682 = vunpack.c.h.b16 %v663
        %v683 = vunpack.c.l.b16 %v664
        %v684 = vunpack.c.h.b16 %v664
        %v685 = vunpack.c.l.b16 %v665
        %v686 = vunpack.c.h.b16 %v665
        %v687 = vunpack.c.l.b16 %v666
        %v688 = vunpack.c.h.b16 %v666
        %v689 = vunpack.c.l.b16 %v667
        %v690 = vunpack.c.h.b16 %v667
        %v691 = vunpack.c.l.b16 %v668
        %v692 = vunpack.c.h.b16 %v668
        %v693 = vpack.c.b16 %v677, %v677
        %v694 = vpack.c.b16 %v678, %v678
        %v695 = vpack.c.b16 %v679, %v679
        %v696 = vpack.c.b16 %v680, %v680
        %v697 = vpack.c.b16 %v681, %v681
        %v698 = vpack.c.b16 %v682, %v682
        %v699 = vpack.c.b16 %v683, %v683
        %v700 = vpack.c.b16 %v684, %v684
        %v701 = vpack.c.b16 %v685, %v685
        %v702 = vpack.c.b16 %v686, %v686
        %v703 = vpack.c.b16 %v687, %v687
        %v704 = vpack.c.b16 %v688, %v688
        %v705 = vpack.c.b16 %v689, %v689
        %v706 = vpack.c.b16 %v690, %v690
        %v707 = vpack.c.b16 %v691, %v691
        %v708 = vpack.c.b16 %v692, %v692
        %vm725 = vcmask 257024
        %726 = vst.msk [vmem:[%s301] sm:$0xf] %vm725, %v693
        %727 = vst.msk [vmem:[%s301 + $0x4] sm:$0xf] %vm725, %v694
        %728 = vst.msk [vmem:[%s301 + $0x8] sm:$0xf] %vm725, %v695
        %729 = vst.msk [vmem:[%s301 + $0xc] sm:$0xf] %vm725, %v696
        %730 = vst.msk [vmem:[%s301 + $0x10] sm:$0xf] %vm725, %v697
        %731 = vst.msk [vmem:[%s301 + $0x14] sm:$0xf] %vm725, %v698
        %732 = vst.msk [vmem:[%s301 + $0x18] sm:$0xf] %vm725, %v699
        %733 = vst.msk [vmem:[%s301 + $0x1c] sm:$0xf] %vm725, %v700
        %734 = vst.msk [vmem:[%s301 + $0x20] sm:$0xf] %vm725, %v701
        %735 = vst.msk [vmem:[%s301 + $0x24] sm:$0xf] %vm725, %v702
        %736 = vst.msk [vmem:[%s301 + $0x28] sm:$0xf] %vm725, %v703
        %737 = vst.msk [vmem:[%s301 + $0x2c] sm:$0xf] %vm725, %v704
        %738 = vst.msk [vmem:[%s301 + $0x30] sm:$0xf] %vm725, %v705
        %739 = vst.msk [vmem:[%s301 + $0x34] sm:$0xf] %vm725, %v706
        %740 = vst.msk [vmem:[%s301 + $0x38] sm:$0xf] %vm725, %v707
        %741 = vst.msk [vmem:[%s301 + $0x3c] sm:$0xf] %vm725, %v708
      $region44: #{tpu_custom_call.1} parent=35 // pred_fallthru
        _
      %s742 = smul.u32 16, %s20
      %p743 = scmp.lt.s32.totalorder %s742, 15
      %s744 = scalar_select %p743, %s742, 15
      %s745 = smul.addr %s744, 4
      %s746 = scalar_lea.vmem %s4, %s745
      // Predicated region
      $region45: #{tpu_custom_call.1} parent=35 // pred_check
        %p747 = pneg %p157
      $region46: #{tpu_custom_call.1} parent=35 // pred_check_branch
        %749 = sbr.rel (%p747) target = $region48
      $region47: #{tpu_custom_call.1} parent=35 // pred_region
        %s750 = smul.u32 16, %s20
      $region48: #{tpu_custom_call.1} parent=35 // pred_fallthru
        _
      // Predicated region
      $region49: #{tpu_custom_call.1} parent=35 // pred_check
        %p751 = pneg %p157
      $region50: #{tpu_custom_call.1} parent=35 // pred_check_branch
        %753 = sbr.rel (%p751) target = $region52
      $region51: #{tpu_custom_call.1} parent=35 // pred_region
        %s754 = smul.u32 16, %s20
        %p755 = scmp.lt.s32.totalorder %s754, 15
        %s756 = scalar_select %p755, %s754, 15
        %s757 = smul.addr %s756, 4
        %s758 = scalar_lea.vmem %s4, %s757
      $region52: #{tpu_custom_call.1} parent=35 // pred_fallthru
        _
    $region36: #{tpu_custom_call.1} parent=5 // pred_fallthru
      _
    %p759 = scmp.le.s32.totalorder 2, %s10
    // Predicated region
    $region53: #{tpu_custom_call.1} parent=5 // pred_check
      %p760 = pneg %p759
    $region54: #{tpu_custom_call.1} parent=5 // pred_check_branch
      %762 = sbr.rel (%p760) target = $region56
    $region55: #{tpu_custom_call.1} parent=5 // pred_region
      %s763 = ssub.s32 %s10, 2
    $region56: #{tpu_custom_call.1} parent=5 // pred_fallthru
      _
  $region6: #{tpu_custom_call.1} parent=0 // loop_footer
    %s14 = sadd.s32 1, %s10
  $region7: #{tpu_custom_call.1} parent=0 // loop_footer_branch
    %9 = sbr.rel target = $region3
  $region8: #{tpu_custom_call.1} parent=0 // loop_exit
    _

</llo_original>
